<compile_context>
chip_gen: v6e
topology: v6e:2x2x1
jax: 0.10.0
libtpu: 0.0.40
codegen_flags: <defaults>
</compile_context>

<pallas_src>
import jax
import jax.numpy as jnp
from jax.experimental import pallas as pl
from jax.experimental.pallas import tpu as pltpu


def _round_up(a, b):
    return ((a + b - 1) // b) * b


def corr2d_kernel(x_ref, halo_ref, w_ref, b_ref, o_ref):
    """One output row-strip of cross-correlation.

    x_ref    : VMEM [TM, Wp]    main input strip (rows i*TM .. i*TM+TM-1)
    halo_ref : VMEM [HALO, Wp]  rows immediately below the strip (>= kh-1 rows)
    w_ref    : SMEM [kh, kw]    kernel weights (scalar reads)
    b_ref    : SMEM [1]         bias
    o_ref    : VMEM [TM, Wp]    output strip (lane-dense, padded width)
    """
    TM, Wp = o_ref.shape
    kh, kw = w_ref.shape

    # Hoisted cast: once per strip (not per tap).
    if kh > 1:
        strip = jnp.concatenate(
            [x_ref[...].astype(jnp.float32), halo_ref[...].astype(jnp.float32)],
            axis=0,
        )  # (TM + HALO, Wp), sublane-aligned concat
    else:
        strip = x_ref[...].astype(jnp.float32)
    n_rows = strip.shape[0]

    acc = jnp.zeros((TM, Wp), jnp.float32)
    # kh*kw is tiny and static -> fully unrolled shifted-window accumulation.
    for ik in range(kh):
        if ik == 0:
            row_win = strip[0:TM, :]
        else:
            # Sublane roll (XLU) + aligned slice instead of a misaligned slice.
            row_win = pltpu.roll(strip, shift=n_rows - ik, axis=0)[0:TM, :]
        for jk in range(kw):
            # Lane roll (XLU) instead of kw unaligned vector-load slices.
            # Wrapped lanes only affect columns >= Wo, discarded by wrapper.
            shifted = row_win if jk == 0 else pltpu.roll(row_win, shift=Wp - jk, axis=1)
            acc = acc + shifted * w_ref[ik, jk]
    o_ref[...] = (acc + b_ref[0]).astype(o_ref.dtype)


def conv2d_forward(x, weight, bias, *, target_strip_bytes=2 * 1024 * 1024):
    """Pallas wrapper reproducing Conv2D.forward semantics (corr2d + bias)."""
    H, W = x.shape
    kh, kw = weight.shape
    Ho, Wo = H - kh + 1, W - kw + 1
    assert Ho > 0 and Wo > 0

    # Lane-dense padded width (multiple of 128) -> unmasked stores.
    Wp = _round_up(W, 128)
    # Halo rows below each strip (multiple of 8, >= kh-1).
    HALO = _round_up(max(kh - 1, 1), 8)

    # Strip height: multiple of HALO (hence of 8), sized so the double-buffered
    # in/out strips stay a few MiB -> safe on v7x's 64 MiB VMEM as well.
    itemsize = jnp.dtype(x.dtype).itemsize
    rows_budget = max(HALO, (target_strip_bytes // (Wp * itemsize)) // HALO * HALO)
    TM = min(_round_up(Ho, HALO), rows_budget)
    n_tiles = pl.cdiv(Ho, TM)

    # Pad: rows to n_tiles*TM plus one trailing halo block; cols to Wp.
    Hp = n_tiles * TM + HALO
    x_pad = jnp.zeros((Hp, Wp), x.dtype).at[:H, :W].set(x)

    grid_spec = pltpu.PrefetchScalarGridSpec(
        num_scalar_prefetch=0,
        grid=(n_tiles,),
        in_specs=[
            # Main strip: rows [i*TM, (i+1)*TM)
            pl.BlockSpec((TM, Wp), lambda i: (i, 0)),
            # Halo: the HALO rows immediately below the strip.
            pl.BlockSpec((HALO, Wp), lambda i: ((i + 1) * (TM // HALO), 0)),
            # Tiny parameters live in SMEM (scalar reads inside the kernel).
            pl.BlockSpec(memory_space=pltpu.MemorySpace.SMEM),   # weight
            pl.BlockSpec(memory_space=pltpu.MemorySpace.SMEM),   # bias
        ],
        out_specs=pl.BlockSpec((TM, Wp), lambda i: (i, 0)),
    )

    out_padded = pl.pallas_call(
        corr2d_kernel,
        out_shape=jax.ShapeDtypeStruct((n_tiles * TM, Wp), x.dtype),
        grid_spec=grid_spec,
        compiler_params=pltpu.CompilerParams(
            dimension_semantics=("parallel",),        # shards strips over v7x's 2 TCs
            vmem_limit_bytes=32 * 1024 * 1024,        # explicit, safe on all gens
        ),
    )(x_pad, x_pad, weight, bias)

    # Slice away padded rows/columns (also discards roll-wraparound lanes).
    return out_padded[:Ho, :Wo]


def _corr2d_ref(x, weight, bias):
    kh, kw = weight.shape
    Ho, Wo = x.shape[0] - kh + 1, x.shape[1] - kw + 1
    ref = jnp.zeros((Ho, Wo), jnp.float32)
    for i in range(kh):
        for j in range(kw):
            ref = ref + x[i:i + Ho, j:j + Wo] * weight[i, j]
    return ref + bias[0]


if __name__ == "__main__":
    key = jax.random.PRNGKey(0)
    k_x, k_w, k_x2, k_w2 = jax.random.split(key, 4)

    # --- Test 1: shapes from the reference script: X is 6x8, kernel (1, 2) ---
    H, W = 6, 8
    kernel_size = (1, 2)
    x = jax.random.normal(k_x, (H, W), dtype=jnp.float32)
    weight = jax.random.uniform(k_w, kernel_size, dtype=jnp.float32)   # torch.rand
    bias = jnp.zeros((1,), dtype=jnp.float32)                          # torch.zeros(1)

    out = conv2d_forward(x, weight, bias)
    out = jax.block_until_ready(out)
    ref = _corr2d_ref(x, weight, bias)
    assert out.shape == ref.shape
    assert jnp.allclose(out, ref, atol=1e-5, rtol=1e-5)

    # --- Test 2: multi-strip grid + halo + sublane/lane rolls (3x3 kernel) ---
    H2, W2 = 48, 200
    kernel_size2 = (3, 3)
    x2 = jax.random.normal(k_x2, (H2, W2), dtype=jnp.float32)
    weight2 = jax.random.uniform(k_w2, kernel_size2, dtype=jnp.float32) - 0.5
    bias2 = jnp.full((1,), 0.25, dtype=jnp.float32)

    # Tiny strip budget -> forces several grid steps (TM=8) to exercise tiling.
    out2 = conv2d_forward(x2, weight2, bias2, target_strip_bytes=8 * 1024)
    out2 = jax.block_until_ready(out2)
    ref2 = _corr2d_ref(x2, weight2, bias2)
    assert out2.shape == ref2.shape
    assert jnp.allclose(out2, ref2, atol=1e-4, rtol=1e-4)

    print("KERNEL_OK")
</pallas_src>

<mosaic_0001>
module attributes {stable_mosaic.version = 11 : i64} {
  func.func @corr2d_kernel(%arg0: i32, %arg1: memref<8x128xf32, #tpu.memory_space<vmem>>, %arg2: memref<8x128xf32, #tpu.memory_space<vmem>>, %arg3: memref<1x2xf32, #tpu.memory_space<smem>>, %arg4: memref<1xf32, #tpu.memory_space<smem>>, %arg5: memref<8x128xf32, #tpu.memory_space<vmem>>) attributes {dimension_semantics = [#tpu.dimension_semantics<parallel>], iteration_bounds = array<i64: 1>, scalar_prefetch = 0 : i64, scratch_operands = 0 : i64, tpu.core_type = #tpu.core_type<tc>, window_params = [{transform_indices = @transform_0, window_bounds = array<i64: 8, 128>}, {transform_indices = @transform_1, window_bounds = array<i64: 8, 128>}, {transform_indices = @transform_2, window_bounds = array<i64: 1, 2>}, {transform_indices = @transform_3, window_bounds = array<i64: 1>}, {transform_indices = @transform_4, window_bounds = array<i64: 8, 128>}]} {
    %c0 = arith.constant 0 : index
    %c0_0 = arith.constant 0 : index
    %0 = vector.load %arg1[%c0, %c0_0] : memref<8x128xf32, #tpu.memory_space<vmem>>, vector<8x128xf32>
    %cst = arith.constant 0.000000e+00 : f32
    %1 = vector.broadcast %cst : f32 to vector<8x128xf32>
    %c0_1 = arith.constant 0 : index
    %c0_2 = arith.constant 0 : index
    %2 = memref.load %arg3[%c0_1, %c0_2] : memref<1x2xf32, #tpu.memory_space<smem>>
    %3 = vector.broadcast %2 : f32 to vector<8x128xf32>
    %4 = arith.mulf %0, %3 : vector<8x128xf32>
    %5 = arith.addf %1, %4 : vector<8x128xf32>
    %c127_i32 = arith.constant 127 : i32
    %6 = tpu.dynamic_rotate %0 by %c127_i32 dim 1 : vector<8x128xf32>, i32 -> vector<8x128xf32>
    %c0_3 = arith.constant 0 : index
    %c1 = arith.constant 1 : index
    %7 = memref.load %arg3[%c0_3, %c1] : memref<1x2xf32, #tpu.memory_space<smem>>
    %8 = vector.broadcast %7 : f32 to vector<8x128xf32>
    %9 = arith.mulf %6, %8 : vector<8x128xf32>
    %10 = arith.addf %5, %9 : vector<8x128xf32>
    %c0_4 = arith.constant 0 : index
    %11 = memref.load %arg4[%c0_4] : memref<1xf32, #tpu.memory_space<smem>>
    %12 = vector.broadcast %11 : f32 to vector<8x128xf32>
    %13 = arith.addf %10, %12 : vector<8x128xf32>
    %c0_5 = arith.constant 0 : index
    %c0_6 = arith.constant 0 : index
    %14 = vector.load %arg5[%c0_5, %c0_6] : memref<8x128xf32, #tpu.memory_space<vmem>>, vector<8x128xf32>
    tpu.vector_store %arg5[%c0_5, %c0_6], %13 {strides = array<i32>} : memref<8x128xf32, #tpu.memory_space<vmem>>, vector<8x128xf32>,
    return
  }
  func.func @transform_0(%arg0: i32) -> (i32, i32) {
    %c0_i32 = arith.constant 0 : i32
    %c0_i32_0 = arith.constant 0 : i32
    return %arg0, %c0_i32 : i32, i32
  }
  func.func @transform_1(%arg0: i32) -> (i32, i32) {
    %c1_i32 = arith.constant 1 : i32
    %0 = arith.addi %arg0, %c1_i32 : i32
    %c1_i32_0 = arith.constant 1 : i32
    %1 = arith.muli %0, %c1_i32_0 : i32
    %c0_i32 = arith.constant 0 : i32
    %c0_i32_1 = arith.constant 0 : i32
    return %1, %c0_i32 : i32, i32
  }
  func.func @transform_2(%arg0: i32) -> (i32, i32) {
    %c0_i32 = arith.constant 0 : i32
    %c0_i32_0 = arith.constant 0 : i32
    %c0_i32_1 = arith.constant 0 : i32
    return %c0_i32, %c0_i32_0 : i32, i32
  }
  func.func @transform_3(%arg0: i32) -> i32 {
    %c0_i32 = arith.constant 0 : i32
    %c0_i32_0 = arith.constant 0 : i32
    return %c0_i32 : i32
  }
  func.func @transform_4(%arg0: i32) -> (i32, i32) {
    %c0_i32 = arith.constant 0 : i32
    %c0_i32_0 = arith.constant 0 : i32
    return %arg0, %c0_i32 : i32, i32
  }
}

</mosaic_0001>

<llo_original>
// kernel: tpu_custom_call.1
$region0: #{tpu_custom_call.1}
  #allocation0 [shape = 'u32[]', space=smem, size = 0x4, offset = 0x4, fixed_abs, tag = 'smem constant byte address 0x4 - core index']
  #allocation1 [shape = 'u32[144,128]{1,0:T(1,128)}', space=vmem, size = 0x12000, scoped, tag = 'internal scratch']
  #allocation2 [shape = 'f32[1]{0:T(128)S(6)}', space=smem, size = 0x200, scoped, tag = 'scoped memory for tpu_custom_call.1']
  %s0 = inlined_call_operand.hbm [shape: f32[16,128], index: 0, kind: input, shape index: {}]
  %s1 = inlined_call_operand.hbm [shape: f32[16,128], index: 1, kind: input, shape index: {}]
  %s2 = inlined_call_operand.vmem [shape: f32[1,2], index: 2, kind: input, shape index: {}]
  %s3 = inlined_call_operand.<no memory space> [shape: f32[1], index: 3, kind: input, shape index: {}]
  %s4 = inlined_call_operand.hbm [shape: f32[8,128], index: 4, kind: output, shape index: {}]
  %s5 = sld [smem:[#allocation0]]
  $region38: #{tpu_custom_call.1} parent=0
    _
  %s7 = ssub.s32 1, %s5
  %s8 = scalar_select 0, %s7, %s5
  %9 = sst [smem:[#allocation2]] %s3
  $region1: #{tpu_custom_call.1} parent=0
    #allocation3 [shape = 'u8[4096]{0}', space=vmem, size = 0x1000, scoped, tag = 'input window, operand 0, single buffered']
    #allocation4 [shape = 's32[1]{0}', space=sflag, size = 0x4, scoped, tag = 'scoped memory for tpu_custom_call.1']
    #allocation5 [shape = 's32[1]{0}', space=sflag, size = 0x4, scoped, tag = 'scoped memory for tpu_custom_call.1']
    #allocation6 [shape = 's32[1]{0}', space=sflag, size = 0x4, scoped, tag = 'scoped memory for tpu_custom_call.1']
    #allocation7 [shape = 'u8[4096]{0}', space=vmem, size = 0x1000, scoped, tag = 'input window, operand 1, single buffered']
    #allocation8 [shape = 's32[1]{0}', space=sflag, size = 0x4, scoped, tag = 'scoped memory for tpu_custom_call.1']
    #allocation9 [shape = 'u8[512]{0}', space=smem, size = 0x200, scoped, tag = 'input window, operand 2, single buffered']
    #allocation10 [shape = 'u8[4096]{0}', space=vmem, size = 0x1000, scoped, tag = 'output window, operand 0, single buffered']
    %10 = vsyncpa [#allocation4], 0
    %11 = vsyncpa [#allocation8], 0
    %12 = vsyncpa [#allocation6], 0
    %13 = vsyncpa [#allocation5], 0
    // Predicated region
    $region2: #{tpu_custom_call.1} parent=1 // pred_check
      _
    $region3: #{tpu_custom_call.1} parent=1 // pred_check_branch
      %15 = sbr.rel (0) target = $region5
    $region4: #{tpu_custom_call.1} parent=1 // pred_region
      %s17 = ssub.s32 128, 128
      %18 = vsyncadd [#allocation4], %s17
      %s20 = sshll.u32 [#allocation3], 4
      %s21 = int_to_ptr.vmem [resolvable:$true] %s20
      %23 = dma.hbm_to_vmem [thread:$0]  %s0, 128, %s21, [#allocation4]
    $region5: #{tpu_custom_call.1} parent=1 // pred_fallthru
      _
    // Predicated region
    $region6: #{tpu_custom_call.1} parent=1 // pred_check
      _
    $region7: #{tpu_custom_call.1} parent=1 // pred_check_branch
      %25 = sbr.rel (0) target = $region9
    $region8: #{tpu_custom_call.1} parent=1 // pred_region
      %s26 = sadd.s32 0, 1
      %s28 = ssub.s32 128, 128
      %29 = vsyncadd [#allocation8], %s28
      %s30 = smul.addr %s26, 128
      %s31 = scalar_lea.hbm %s1, %s30
      %s33 = sshll.u32 [#allocation7], 4
      %s34 = int_to_ptr.vmem [resolvable:$true] %s33
      %36 = dma.hbm_to_vmem [thread:$0]  %s31, 128, %s34, [#allocation8]
    $region9: #{tpu_custom_call.1} parent=1 // pred_fallthru
      _
    // Predicated region
    $region10: #{tpu_custom_call.1} parent=1 // pred_check
      _
    $region11: #{tpu_custom_call.1} parent=1 // pred_check_branch
      %38 = sbr.rel (0) target = $region13
    $region12: #{tpu_custom_call.1} parent=1 // pred_region
      %s40 = ssub.s32 16, 16
      %41 = vsyncadd [#allocation6], %s40
      %s43 = sshll.u32 %s2, 4
      %s44 = int_to_ptr.vmem [resolvable:$true] %s43
      %46 = dma.vmem_to_smem %s44, 16, [#allocation9], [#allocation6]
    $region13: #{tpu_custom_call.1} parent=1 // pred_fallthru
      _
    // Predicated region
    $region14: #{tpu_custom_call.1} parent=1 // pred_check
      _
    $region15: #{tpu_custom_call.1} parent=1 // pred_check_branch
      %48 = sbr.rel (0) target = $region17
    $region16: #{tpu_custom_call.1} parent=1 // pred_region
      _
    $region17: #{tpu_custom_call.1} parent=1 // pred_fallthru
      _
    // Predicated region
    $region18: #{tpu_custom_call.1} parent=1 // pred_check
      _
    $region19: #{tpu_custom_call.1} parent=1 // pred_check_branch
      %50 = sbr.rel (0) target = $region21
    $region20: #{tpu_custom_call.1} parent=1 // pred_region
      %51 = dma.done [#allocation4], 128
    $region21: #{tpu_custom_call.1} parent=1 // pred_fallthru
      _
    // Predicated region
    $region22: #{tpu_custom_call.1} parent=1 // pred_check
      _
    $region23: #{tpu_custom_call.1} parent=1 // pred_check_branch
      %53 = sbr.rel (0) target = $region25
    $region24: #{tpu_custom_call.1} parent=1 // pred_region
      %54 = dma.done [#allocation8], 128
    $region25: #{tpu_custom_call.1} parent=1 // pred_fallthru
      _
    // Predicated region
    $region26: #{tpu_custom_call.1} parent=1 // pred_check
      _
    $region27: #{tpu_custom_call.1} parent=1 // pred_check_branch
      %56 = sbr.rel (0) target = $region29
    $region28: #{tpu_custom_call.1} parent=1 // pred_region
      %57 = dma.done [#allocation6], 16
    $region29: #{tpu_custom_call.1} parent=1 // pred_fallthru
      _
    %58 = sfence
    %s59 = sadd.s32 0, 1
    %v60 = vld [vmem:[#allocation3] sm:$0xff]
    %s61 = sld [smem:[#allocation9]]
    %v62 = vstv %s61
    %v63 = vmul.f32 %v60, %v62
    %v64 = vadd.f32 %v63, 0.0
    %65 = vrot.lane.b32.xlu0 %v60, 127
    %v66 = vpop.permute.xlu0 %65
    %s67 = sld [smem:[#allocation9 + $0x1]]
    %v68 = vstv %s67
    %v69 = vmul.f32 %v66, %v68
    %v70 = vadd.f32 %v64, %v69
    %s71 = sld [smem:[#allocation2]]
    %v72 = vstv %s71
    %v73 = vadd.f32 %v70, %v72
    %74 = vst [vmem:[#allocation10] sm:$0xff] %v73
    // Predicated region
    $region30: #{tpu_custom_call.1} parent=1 // pred_check
      _
    $region31: #{tpu_custom_call.1} parent=1 // pred_check_branch
      %76 = sbr.rel (0) target = $region33
    $region32: #{tpu_custom_call.1} parent=1 // pred_region
      %s78 = ssub.s32 128, 128
      %79 = vsyncadd [#allocation5], %s78
      %s81 = sshll.u32 [#allocation10], 4
      %s82 = int_to_ptr.vmem [resolvable:$true] %s81
      %84 = dma.vmem_to_hbm [thread:$0]  %s82, 128, %s4, [#allocation5]
    $region33: #{tpu_custom_call.1} parent=1 // pred_fallthru
      _
    // Predicated region
    $region34: #{tpu_custom_call.1} parent=1 // pred_check
      _
    $region35: #{tpu_custom_call.1} parent=1 // pred_check_branch
      %86 = sbr.rel (0) target = $region37
    $region36: #{tpu_custom_call.1} parent=1 // pred_region
      %87 = dma.done [#allocation5], 128
    $region37: #{tpu_custom_call.1} parent=1 // pred_fallthru
      _
    %88 = vsyncpa [#allocation4], 1
    %89 = vsyncpa [#allocation8], 1
    %90 = vsyncpa [#allocation5], 1
    %91 = vsyncpa [#allocation6], 1

</llo_original>
